<compile_context>
chip_gen: v7x
topology: tpu7x:2x2x1
jax: 0.10.0
libtpu: 0.0.40
codegen_flags: <defaults>
</compile_context>

<pallas_src>
import jax
import jax.numpy as jnp
from jax.experimental import pallas as pl
from jax.experimental.pallas import tpu as pltpu


def _static_agg_kernel(adjbd_ref, x_ref, w1e_ref, mmean_ref, w2e_ref, gb_ref,
                       out_ref):
    """One batch block per grid step; everything stays rows=(b,m), lanes=(.,t).

    adjbd_ref: (1, bblk*M, bblk*N)  block-diagonal adjacency for this block
    x_ref    : (bblk, N, D*T+1)     [pred_context | ones] in native (d,t) lanes
    w1e_ref  : (D*T+1, C*T)         [w1 (x) I_T ; b1 row]      (resident)
    mmean_ref: (C*T, C*T)           kron(ones(C,C)/C, I_T)     (resident)
    w2e_ref  : (C*T, O*T)           w2 (x) I_T                 (resident)
    gb_ref   : (3, P)               rows: gamma_ct, beta_ct, b2_ot
    out_ref  : (bblk, M, O*T)       lane-dense rows, (o, t)-major
    """
    bblk, n, k1 = x_ref.shape
    m = out_ref.shape[1]
    ct = mmean_ref.shape[0]
    ot = w2e_ref.shape[1]

    x = x_ref[...].reshape(bblk * n, k1)          # (bblk*N, D*T+1)  free reshape
    adj_bd = adjbd_ref[0]                         # (bblk*M, bblk*N)

    # --- whole-block aggregation + rowsum in ONE MXU matmul (ones column) ---
    agg = jnp.dot(adj_bd, x,
                  preferred_element_type=jnp.float32)          # (BM, D*T+1)

    # --- proj_pred + b1 fold: single resident matmul, stays in (c,t) lanes ---
    y2 = jnp.dot(agg, w1e_ref[...],
                 preferred_element_type=jnp.float32)           # (BM, C*T)

    # --- LayerNorm over channels: two independent reduce-broadcast matmuls ---
    mmean = mmean_ref[...]
    mean_b = jnp.dot(y2, mmean, preferred_element_type=jnp.float32)      # E[x]
    msq_b = jnp.dot(y2 * y2, mmean, preferred_element_type=jnp.float32)  # E[x^2]
    var = msq_b - mean_b * mean_b                                        # biased

    gamma = gb_ref[0:1, 0:ct]
    beta = gb_ref[1:2, 0:ct]
    b2 = gb_ref[2:3, 0:ot]
    y3 = (y2 - mean_b) * jax.lax.rsqrt(var + 1e-5) * gamma + beta        # (BM, C*T)

    # --- proj_out: rows come out already (o,t)-major -> pure reshape, no XLU ---
    y4 = jnp.dot(y3, w2e_ref[...],
                 preferred_element_type=jnp.float32) + b2                # (BM, O*T)
    out_ref[...] = y4.reshape(bblk, m, ot).astype(out_ref.dtype)


def static_agg(pred_context, adj, params, *, max_batch_block=8):
    """pred_context: (B, N, D, T) f32;  adj: (B, M, N) f32.
    Returns (B, M, out_channels, T) f32 (PyTorch layout)."""
    B, N, D, T = pred_context.shape
    M = adj.shape[1]
    C = params["w1"].shape[1]
    O = params["w2"].shape[1]
    CT, OT = C * T, O * T
    P = max(CT, OT)
    K1 = D * T + 1
    f32 = jnp.float32

    # Batch block: largest divisor of B (<= max_batch_block), but keep the grid
    # >= 2 steps whenever B >= 2 so the "parallel" axis can shard across v7x's
    # two TensorCores (no effect on v5e/v6e, single TC).
    cap = max(1, min(max_batch_block, B if B < 2 else B // 2))
    bblk = 1
    for cand in range(cap, 0, -1):
        if B % cand == 0:
            bblk = cand
            break
    G = B // bblk

    # Native layout in (pure reshape); ones column fuses rowsum(adj) into the
    # aggregation matmul.
    x = pred_context.astype(f32).reshape(B, N, D * T)
    x_ext = jnp.concatenate([x, jnp.ones((B, N, 1), f32)], axis=-1)  # (B,N,D*T+1)

    # Block-diagonal adjacency per grid step: one matmul aggregates the whole
    # batch block (bblk x fewer MXU issue/drain round-trips).
    adj_g = adj.astype(f32).reshape(G, bblk, M, N)
    eye_b = jnp.eye(bblk, dtype=f32)
    adj_bd = (adj_g[:, :, :, None, :] * eye_b[None, :, None, :, None]) \
        .reshape(G, bblk * M, bblk * N)

    # Resident constants: kron(., I_T) keeps the (channel, t)-in-lanes layout
    # through proj_pred, LayerNorm and proj_out -> zero in-kernel relayouts.
    eye_t = jnp.eye(T, dtype=f32)
    w1ext = jnp.concatenate(
        [jnp.kron(params["w1"].astype(f32), eye_t),
         jnp.repeat(params["b1"].reshape(C).astype(f32), T).reshape(1, CT)],
        axis=0)                                                   # (D*T+1, C*T)
    mmean = jnp.kron(jnp.full((C, C), 1.0 / C, f32), eye_t)       # (C*T, C*T)
    w2ext = jnp.kron(params["w2"].astype(f32), eye_t)             # (C*T, O*T)

    def _row(v, width):
        v = jnp.repeat(v.reshape(-1).astype(f32), T)
        return jnp.pad(v, (0, P - width))
    gb = jnp.stack([_row(params["gamma"], CT), _row(params["beta"], CT),
                    _row(params["b2"], OT)])                      # (3, P)

    cost = pl.CostEstimate(
        flops=int(2 * B * M * N * D * T          # aggregation
                  + 2 * B * M * T * D * C        # proj_pred
                  + 2 * B * M * T * C * O),      # proj_out
        transcendentals=int(B * M * T),          # rsqrt per (b, m, t)
        bytes_accessed=int(4 * (x_ext.size + adj_bd.size + B * M * OT
                                + w1ext.size + mmean.size + w2ext.size
                                + gb.size)))

    out = pl.pallas_call(
        _static_agg_kernel,
        out_shape=jax.ShapeDtypeStruct((B, M, OT), f32),
        grid_spec=pltpu.PrefetchScalarGridSpec(
            num_scalar_prefetch=0,
            grid=(G,),
            in_specs=[
                pl.BlockSpec((1, bblk * M, bblk * N), lambda g: (g, 0, 0)),  # adj_bd
                pl.BlockSpec((bblk, N, K1), lambda g: (g, 0, 0)),            # x | 1
                pl.BlockSpec((K1, CT), lambda g: (0, 0)),                    # w1(x)I_T|b1
                pl.BlockSpec((CT, CT), lambda g: (0, 0)),                    # mean mat
                pl.BlockSpec((CT, OT), lambda g: (0, 0)),                    # w2(x)I_T
                pl.BlockSpec((3, P), lambda g: (0, 0)),                      # gamma/beta/b2
            ],
            out_specs=pl.BlockSpec((bblk, M, OT), lambda g: (g, 0, 0)),
        ),
        compiler_params=pltpu.CompilerParams(
            dimension_semantics=("parallel",)),                   # v7x: 2 TCs
        cost_estimate=cost,
    )(adj_bd, x_ext, w1ext, mmean, w2ext, gb)

    # Rows are already (o, t)-ordered: pure reshape back to PyTorch layout.
    return out.reshape(B, M, O, T)


def static_agg_ref(pred_context, adj, p):
    """Pure-JAX reference mirroring the PyTorch forward exactly (f32 precision)."""
    hi = jax.lax.Precision.HIGHEST
    y1 = jnp.einsum("bndt,dc->bnct", pred_context, p["w1"], precision=hi) \
        + p["b1"].reshape(-1)[None, None, :, None]
    y2 = jnp.einsum("bmn,bnct->bmct", adj, y1, precision=hi)
    z = jnp.transpose(y2, (0, 1, 3, 2))                       # (b, m, t, c)
    mean = z.mean(-1, keepdims=True)
    var = ((z - mean) ** 2).mean(-1, keepdims=True)
    z = (z - mean) / jnp.sqrt(var + 1e-5) * p["gamma"].reshape(-1) + p["beta"].reshape(-1)
    y3 = jnp.transpose(z, (0, 1, 3, 2))                       # (b, m, c, t)
    return jnp.einsum("bmct,co->bmot", y3, p["w2"], precision=hi) \
        + p["b2"].reshape(-1)[None, None, :, None]


if __name__ == "__main__":
    # Small shapes consistent with StaticAgg(pred_in=1, channels=32, out_channels=32)
    B, N, M, T = 2, 8, 8, 8
    D, C, O = 1, 32, 32   # pred_in, channels, out_channels

    key = jax.random.PRNGKey(0)
    k = jax.random.split(key, 8)

    # Deterministic synthetic parameters (Conv1d 1x1 weights stored as (in, out)).
    params = {
        "w1": 0.1 * jax.random.normal(k[0], (D, C), jnp.float32),
        "b1": 0.1 * jax.random.normal(k[1], (1, C), jnp.float32),
        "gamma": 1.0 + 0.1 * jax.random.normal(k[2], (1, C), jnp.float32),
        "beta": 0.1 * jax.random.normal(k[3], (1, C), jnp.float32),
        "w2": 0.1 * jax.random.normal(k[4], (C, O), jnp.float32),
        "b2": 0.1 * jax.random.normal(k[5], (1, O), jnp.float32),
    }

    pred_context = jax.random.normal(k[6], (B, N, D, T), jnp.float32)
    adj = jax.random.normal(k[7], (B, M, N), jnp.float32)

    out = static_agg(pred_context, adj, params)
    jax.block_until_ready(out)

    ref = static_agg_ref(pred_context, adj, params)
    assert out.shape == (B, M, O, T), out.shape
    assert jnp.allclose(out, ref, rtol=1e-3, atol=1e-3), \
        float(jnp.max(jnp.abs(out - ref)))

    print("KERNEL_OK")
</pallas_src>

<mosaic_0001>
module attributes {stable_mosaic.version = 11 : i64} {
  func.func @_static_agg_kernel(%arg0: i32, %arg1: memref<1x8x8xf32, #tpu.memory_space<vmem>>, %arg2: memref<1x8x9xf32, #tpu.memory_space<vmem>>, %arg3: memref<9x256xf32, #tpu.memory_space<vmem>>, %arg4: memref<256x256xf32, #tpu.memory_space<vmem>>, %arg5: memref<256x256xf32, #tpu.memory_space<vmem>>, %arg6: memref<3x256xf32, #tpu.memory_space<vmem>>, %arg7: memref<1x8x256xf32, #tpu.memory_space<vmem>>) attributes {dimension_semantics = [#tpu.dimension_semantics<parallel>], iteration_bounds = array<i64: 2>, scalar_prefetch = 0 : i64, scratch_operands = 0 : i64, tpu.core_type = #tpu.core_type<tc>, window_params = [{transform_indices = @transform_0, window_bounds = array<i64: 1, 8, 8>}, {transform_indices = @transform_1, window_bounds = array<i64: 1, 8, 9>}, {pipeline_mode = #tpu.pipeline_mode<synchronous>, transform_indices = @transform_2, window_bounds = array<i64: 9, 256>}, {pipeline_mode = #tpu.pipeline_mode<synchronous>, transform_indices = @transform_3, window_bounds = array<i64: 256, 256>}, {pipeline_mode = #tpu.pipeline_mode<synchronous>, transform_indices = @transform_4, window_bounds = array<i64: 256, 256>}, {pipeline_mode = #tpu.pipeline_mode<synchronous>, transform_indices = @transform_5, window_bounds = array<i64: 3, 256>}, {transform_indices = @transform_6, window_bounds = array<i64: 1, 8, 256>}]} {
    %c0 = arith.constant 0 : index
    %c0_0 = arith.constant 0 : index
    %c0_1 = arith.constant 0 : index
    %0 = vector.load %arg2[%c0, %c0_0, %c0_1] : memref<1x8x9xf32, #tpu.memory_space<vmem>>, vector<1x8x9xf32>
    %1 = vector.shape_cast %0 : vector<1x8x9xf32> to vector<8x9xf32>
    %c0_2 = arith.constant 0 : index
    %c0_3 = arith.constant 0 : index
    %c0_4 = arith.constant 0 : index
    %2 = vector.load %arg1[%c0_2, %c0_3, %c0_4] : memref<1x8x8xf32, #tpu.memory_space<vmem>>, vector<1x8x8xf32>
    %3 = vector.shape_cast %2 : vector<1x8x8xf32> to vector<8x8xf32>
    %cst = arith.constant dense<0.000000e+00> : vector<8x9xf32>
    %4 = tpu.matmul %3, %1, %cst {dimension_numbers = #tpu.dot_dimension_numbers<[1], [0], [0], [1], [0, 0, 1, 1], [], []>} : vector<8x8xf32>, vector<8x9xf32>, vector<8x9xf32> -> vector<8x9xf32>
    %c0_5 = arith.constant 0 : index
    %c0_6 = arith.constant 0 : index
    %5 = vector.load %arg3[%c0_5, %c0_6] : memref<9x256xf32, #tpu.memory_space<vmem>>, vector<9x256xf32>
    %cst_7 = arith.constant dense<0.000000e+00> : vector<8x256xf32>
    %6 = tpu.matmul %4, %5, %cst_7 {dimension_numbers = #tpu.dot_dimension_numbers<[1], [0], [0], [1], [0, 0, 1, 1], [], []>} : vector<8x9xf32>, vector<9x256xf32>, vector<8x256xf32> -> vector<8x256xf32>
    %c0_8 = arith.constant 0 : index
    %c0_9 = arith.constant 0 : index
    %7 = vector.load %arg4[%c0_8, %c0_9] : memref<256x256xf32, #tpu.memory_space<vmem>>, vector<256x256xf32>
    %cst_10 = arith.constant dense<0.000000e+00> : vector<8x256xf32>
    %8 = tpu.matmul %6, %7, %cst_10 {dimension_numbers = #tpu.dot_dimension_numbers<[1], [0], [0], [1], [0, 0, 1, 1], [], []>} : vector<8x256xf32>, vector<256x256xf32>, vector<8x256xf32> -> vector<8x256xf32>
    %9 = arith.mulf %6, %6 : vector<8x256xf32>
    %cst_11 = arith.constant dense<0.000000e+00> : vector<8x256xf32>
    %10 = tpu.matmul %9, %7, %cst_11 {dimension_numbers = #tpu.dot_dimension_numbers<[1], [0], [0], [1], [0, 0, 1, 1], [], []>} : vector<8x256xf32>, vector<256x256xf32>, vector<8x256xf32> -> vector<8x256xf32>
    %11 = arith.mulf %8, %8 : vector<8x256xf32>
    %12 = arith.subf %10, %11 : vector<8x256xf32>
    %c0_12 = arith.constant 0 : index
    %c0_13 = arith.constant 0 : index
    %13 = vector.load %arg6[%c0_12, %c0_13] : memref<3x256xf32, #tpu.memory_space<vmem>>, vector<1x256xf32>
    %c1 = arith.constant 1 : index
    %c0_14 = arith.constant 0 : index
    %14 = vector.load %arg6[%c1, %c0_14] : memref<3x256xf32, #tpu.memory_space<vmem>>, vector<1x256xf32>
    %c2 = arith.constant 2 : index
    %c0_15 = arith.constant 0 : index
    %15 = vector.load %arg6[%c2, %c0_15] : memref<3x256xf32, #tpu.memory_space<vmem>>, vector<1x256xf32>
    %16 = arith.subf %6, %8 : vector<8x256xf32>
    %cst_16 = arith.constant 9.99999974E-6 : f32
    %17 = vector.broadcast %cst_16 : f32 to vector<8x256xf32>
    %18 = arith.addf %12, %17 : vector<8x256xf32>
    %19 = math.rsqrt %18 : vector<8x256xf32>
    %20 = arith.mulf %16, %19 : vector<8x256xf32>
    %21 = vector.broadcast %13 : vector<1x256xf32> to vector<8x256xf32>
    %22 = arith.mulf %20, %21 : vector<8x256xf32>
    %23 = vector.broadcast %14 : vector<1x256xf32> to vector<8x256xf32>
    %24 = arith.addf %22, %23 : vector<8x256xf32>
    %c0_17 = arith.constant 0 : index
    %c0_18 = arith.constant 0 : index
    %25 = vector.load %arg5[%c0_17, %c0_18] : memref<256x256xf32, #tpu.memory_space<vmem>>, vector<256x256xf32>
    %cst_19 = arith.constant dense<0.000000e+00> : vector<8x256xf32>
    %26 = tpu.matmul %24, %25, %cst_19 {dimension_numbers = #tpu.dot_dimension_numbers<[1], [0], [0], [1], [0, 0, 1, 1], [], []>} : vector<8x256xf32>, vector<256x256xf32>, vector<8x256xf32> -> vector<8x256xf32>
    %27 = vector.broadcast %15 : vector<1x256xf32> to vector<8x256xf32>
    %28 = arith.addf %26, %27 : vector<8x256xf32>
    %29 = vector.shape_cast %28 : vector<8x256xf32> to vector<1x8x256xf32>
    %c0_20 = arith.constant 0 : index
    %c0_21 = arith.constant 0 : index
    %c0_22 = arith.constant 0 : index
    %30 = vector.load %arg7[%c0_20, %c0_21, %c0_22] : memref<1x8x256xf32, #tpu.memory_space<vmem>>, vector<1x8x256xf32>
    tpu.vector_store %arg7[%c0_20, %c0_21, %c0_22], %29 {strides = array<i32>} : memref<1x8x256xf32, #tpu.memory_space<vmem>>, vector<1x8x256xf32>,
    return
  }
  func.func @transform_0(%arg0: i32) -> (i32, i32, i32) {
    %c0_i32 = arith.constant 0 : i32
    %c0_i32_0 = arith.constant 0 : i32
    %c0_i32_1 = arith.constant 0 : i32
    return %arg0, %c0_i32, %c0_i32_0 : i32, i32, i32
  }
  func.func @transform_1(%arg0: i32) -> (i32, i32, i32) {
    %c0_i32 = arith.constant 0 : i32
    %c0_i32_0 = arith.constant 0 : i32
    %c0_i32_1 = arith.constant 0 : i32
    return %arg0, %c0_i32, %c0_i32_0 : i32, i32, i32
  }
  func.func @transform_2(%arg0: i32) -> (i32, i32) {
    %c0_i32 = arith.constant 0 : i32
    %c0_i32_0 = arith.constant 0 : i32
    %c0_i32_1 = arith.constant 0 : i32
    return %c0_i32, %c0_i32_0 : i32, i32
  }
  func.func @transform_3(%arg0: i32) -> (i32, i32) {
    %c0_i32 = arith.constant 0 : i32
    %c0_i32_0 = arith.constant 0 : i32
    %c0_i32_1 = arith.constant 0 : i32
    return %c0_i32, %c0_i32_0 : i32, i32
  }
  func.func @transform_4(%arg0: i32) -> (i32, i32) {
    %c0_i32 = arith.constant 0 : i32
    %c0_i32_0 = arith.constant 0 : i32
    %c0_i32_1 = arith.constant 0 : i32
    return %c0_i32, %c0_i32_0 : i32, i32
  }
  func.func @transform_5(%arg0: i32) -> (i32, i32) {
    %c0_i32 = arith.constant 0 : i32
    %c0_i32_0 = arith.constant 0 : i32
    %c0_i32_1 = arith.constant 0 : i32
    return %c0_i32, %c0_i32_0 : i32, i32
  }
  func.func @transform_6(%arg0: i32) -> (i32, i32, i32) {
    %c0_i32 = arith.constant 0 : i32
    %c0_i32_0 = arith.constant 0 : i32
    %c0_i32_1 = arith.constant 0 : i32
    return %arg0, %c0_i32, %c0_i32_0 : i32, i32, i32
  }
}

</mosaic_0001>

<llo_original>
// kernel: tpu_custom_call.1
$region0: #{tpu_custom_call.1}
  #allocation0 [shape = 'u32[]', space=smem, size = 0x4, offset = 0x4, fixed_abs, tag = 'smem constant byte address 0x4 - core index']
  #allocation1 [shape = 'u32[144,128]{1,0:T(1,128)}', space=vmem, size = 0x12000, scoped, tag = 'internal scratch']
  %s0 = inlined_call_operand.hbm [shape: f32[2,8,8], index: 0, kind: input, shape index: {}]
  %s1 = inlined_call_operand.hbm [shape: f32[2,8,9], index: 1, kind: input, shape index: {}]
  %s2 = inlined_call_operand.hbm [shape: f32[9,256], index: 2, kind: input, shape index: {}]
  %s3 = inlined_call_operand.hbm [shape: f32[256,256], index: 3, kind: input, shape index: {}]
  %s4 = inlined_call_operand.hbm [shape: f32[256,256], index: 4, kind: input, shape index: {}]
  %s5 = inlined_call_operand.vmem [shape: f32[3,256], index: 5, kind: input, shape index: {}]
  %s6 = inlined_call_operand.hbm [shape: f32[2,8,256], index: 6, kind: output, shape index: {}]
  %s7 = sld [smem:[#allocation0]]
  $region77: #{tpu_custom_call.1} parent=0
    _
  %s9 = ssub.s32 1, %s7
  %s10 = scalar_select 0, %s9, %s7
  $region1: #{tpu_custom_call.1} parent=0
    #allocation2 [shape = 'u8[8192]{0}', space=vmem, size = 0x2000, scoped, tag = 'input window, operand 0']
    #allocation3 [shape = 's32[2]{0}', space=sflag, size = 0x8, scoped, tag = 'scoped memory for tpu_custom_call.1']
    #allocation4 [shape = 's32[2]{0}', space=sflag, size = 0x8, scoped, tag = 'scoped memory for tpu_custom_call.1']
    #allocation5 [shape = 'u8[8192]{0}', space=vmem, size = 0x2000, scoped, tag = 'input window, operand 1']
    #allocation6 [shape = 's32[2]{0}', space=sflag, size = 0x8, scoped, tag = 'scoped memory for tpu_custom_call.1']
    #allocation7 [shape = 'u8[16384]{0}', space=vmem, size = 0x4000, scoped, tag = 'input window, operand 2, single buffered']
    #allocation8 [shape = 'u8[262144]{0}', space=vmem, size = 0x40000, scoped, tag = 'input window, operand 3, single buffered']
    #allocation9 [shape = 's32[1]{0}', space=sflag, size = 0x4, scoped, tag = 'scoped memory for tpu_custom_call.1']
    #allocation10 [shape = 'u8[262144]{0}', space=vmem, size = 0x40000, scoped, tag = 'input window, operand 4, single buffered']
    #allocation11 [shape = 'u8[16384]{0}', space=vmem, size = 0x4000, scoped, tag = 'output window, operand 0']
    %11 = vsyncpa [#allocation3], 0
    %s12 = scalar_lea.sflag [#allocation3], 1
    %13 = vsyncpa %s12, 0
    %14 = vsyncpa [#allocation6], 0
    %s15 = scalar_lea.sflag [#allocation6], 1
    %16 = vsyncpa %s15, 0
    %17 = vsyncpa [#allocation9], 0
    %18 = vsyncpa [#allocation4], 0
    %s19 = scalar_lea.sflag [#allocation4], 1
    %20 = vsyncpa %s19, 0
    loop: start=0, step=1, limit=4
    $region2: #{tpu_custom_call.1} parent=1 // loop_pre_header
      _
    $region3: #{tpu_custom_call.1} parent=1 // loop_header
      %s22 = sphi 0, %s26
      %p23 = scmp.ge.s32.totalorder %s22, 4
      %s32 = sphi 0, %s34
      %s35 = sphi 0, %s32
      %s36 = sphi 0, %s35
      %s52 = sphi 0, %s36
      %s58 = sphi 0, %s60
      %s61 = sphi 0, %s58
      %s62 = sphi 0, %s61
      %s78 = sphi 0, %s62
      %s82 = sphi 0, %s82
      %s84 = sphi 0, %s82
      %s85 = sphi 0, %s84
      %s99 = sphi 0, %s85
      %s103 = sphi 0, %s103
      %s105 = sphi 0, %s103
      %s106 = sphi 0, %s105
      %s120 = sphi 0, %s106
      %s124 = sphi 0, %s124
      %s126 = sphi 0, %s124
      %s127 = sphi 0, %s126
      %s141 = sphi 0, %s127
      %s145 = sphi 0, %s145
      %s147 = sphi 0, %s145
      %s148 = sphi 0, %s147
      %s162 = sphi 0, %s148
      %s168 = sphi 0, %s170
      %s171 = sphi 0, %s168
      %s172 = sphi 0, %s171
      %s188 = sphi 0, %s172
    $region4: #{tpu_custom_call.1} parent=1 // loop_header_branch
      %25 = sbr.rel (%p23) target = $region8
    $region5: #{tpu_custom_call.1} parent=1 // loop_body
      %s27 = ssub.s32 %s22, 1
      %s28 = ssub.s32 %s22, 2
      %s29 = sadd.s32 %s22, 1
      %s30 = ssub.s32 %s22, %s29
      %p31 = scmp.eq.s32.totalorder %s30, 0
      %s33 = sadd.s32 %s32, 1
      %s34 = scalar_select %p31, %s32, %s33
      %p37 = pneg %p31
      %p38 = scmp.eq.s32.totalorder %s22, 1
      %p39 = por %p37, %p38
      %p40 = scmp.ne.s32.totalorder %s32, %s35
      %p41 = scmp.eq.s32.totalorder %s22, 0
      %p42 = por %p40, %p41
      %p43 = scmp.ne.s32.totalorder %s32, %s35
      %p44 = scmp.eq.s32.totalorder %s27, 1
      %p45 = por %p43, %p44
      %p46 = scmp.ne.s32.totalorder %s35, %s36
      %p47 = scmp.eq.s32.totalorder %s27, 0
      %p48 = por %p46, %p47
      %p49 = scmp.ne.s32.totalorder %s35, %s36
      %p50 = scmp.eq.s32.totalorder %s28, 1
      %p51 = por %p49, %p50
      %p53 = scmp.ne.s32.totalorder %s36, %s52
      %p54 = scmp.eq.s32.totalorder %s28, 0
      %p55 = por %p53, %p54
      %s56 = ssub.s32 %s22, %s29
      %p57 = scmp.eq.s32.totalorder %s56, 0
      %s59 = sadd.s32 %s58, 1
      %s60 = scalar_select %p57, %s58, %s59
      %p63 = pneg %p57
      %p64 = scmp.eq.s32.totalorder %s22, 1
      %p65 = por %p63, %p64
      %p66 = scmp.ne.s32.totalorder %s58, %s61
      %p67 = scmp.eq.s32.totalorder %s22, 0
      %p68 = por %p66, %p67
      %p69 = scmp.ne.s32.totalorder %s58, %s61
      %p70 = scmp.eq.s32.totalorder %s27, 1
      %p71 = por %p69, %p70
      %p72 = scmp.ne.s32.totalorder %s61, %s62
      %p73 = scmp.eq.s32.totalorder %s27, 0
      %p74 = por %p72, %p73
      %p75 = scmp.ne.s32.totalorder %s61, %s62
      %p76 = scmp.eq.s32.totalorder %s28, 1
      %p77 = por %p75, %p76
      %p79 = scmp.ne.s32.totalorder %s62, %s78
      %p80 = scmp.eq.s32.totalorder %s28, 0
      %p81 = por %p79, %p80
      %s83 = sadd.s32 %s82, 1
      %p86 = scmp.eq.s32.totalorder %s22, 1
      %p87 = scmp.ne.s32.totalorder %s82, %s84
      %p88 = scmp.eq.s32.totalorder %s22, 0
      %p89 = por %p87, %p88
      %p90 = scmp.ne.s32.totalorder %s82, %s84
      %p91 = scmp.eq.s32.totalorder %s27, 1
      %p92 = por %p90, %p91
      %p93 = scmp.ne.s32.totalorder %s84, %s85
      %p94 = scmp.eq.s32.totalorder %s27, 0
      %p95 = por %p93, %p94
      %p96 = scmp.ne.s32.totalorder %s84, %s85
      %p97 = scmp.eq.s32.totalorder %s28, 1
      %p98 = por %p96, %p97
      %p100 = scmp.ne.s32.totalorder %s85, %s99
      %p101 = scmp.eq.s32.totalorder %s28, 0
      %p102 = por %p100, %p101
      %s104 = sadd.s32 %s103, 1
      %p107 = scmp.eq.s32.totalorder %s22, 1
      %p108 = scmp.ne.s32.totalorder %s103, %s105
      %p109 = scmp.eq.s32.totalorder %s22, 0
      %p110 = por %p108, %p109
      %p111 = scmp.ne.s32.totalorder %s103, %s105
      %p112 = scmp.eq.s32.totalorder %s27, 1
      %p113 = por %p111, %p112
      %p114 = scmp.ne.s32.totalorder %s105, %s106
      %p115 = scmp.eq.s32.totalorder %s27, 0
      %p116 = por %p114, %p115
      %p117 = scmp.ne.s32.totalorder %s105, %s106
      %p118 = scmp.eq.s32.totalorder %s28, 1
      %p119 = por %p117, %p118
      %p121 = scmp.ne.s32.totalorder %s106, %s120
      %p122 = scmp.eq.s32.totalorder %s28, 0
      %p123 = por %p121, %p122
      %s125 = sadd.s32 %s124, 1
      %p128 = scmp.eq.s32.totalorder %s22, 1
      %p129 = scmp.ne.s32.totalorder %s124, %s126
      %p130 = scmp.eq.s32.totalorder %s22, 0
      %p131 = por %p129, %p130
      %p132 = scmp.ne.s32.totalorder %s124, %s126
      %p133 = scmp.eq.s32.totalorder %s27, 1
      %p134 = por %p132, %p133
      %p135 = scmp.ne.s32.totalorder %s126, %s127
      %p136 = scmp.eq.s32.totalorder %s27, 0
      %p137 = por %p135, %p136
      %p138 = scmp.ne.s32.totalorder %s126, %s127
      %p139 = scmp.eq.s32.totalorder %s28, 1
      %p140 = por %p138, %p139
      %p142 = scmp.ne.s32.totalorder %s127, %s141
      %p143 = scmp.eq.s32.totalorder %s28, 0
      %p144 = por %p142, %p143
      %s146 = sadd.s32 %s145, 1
      %p149 = scmp.eq.s32.totalorder %s22, 1
      %p150 = scmp.ne.s32.totalorder %s145, %s147
      %p151 = scmp.eq.s32.totalorder %s22, 0
      %p152 = por %p150, %p151
      %p153 = scmp.ne.s32.totalorder %s145, %s147
      %p154 = scmp.eq.s32.totalorder %s27, 1
      %p155 = por %p153, %p154
      %p156 = scmp.ne.s32.totalorder %s147, %s148
      %p157 = scmp.eq.s32.totalorder %s27, 0
      %p158 = por %p156, %p157
      %p159 = scmp.ne.s32.totalorder %s147, %s148
      %p160 = scmp.eq.s32.totalorder %s28, 1
      %p161 = por %p159, %p160
      %p163 = scmp.ne.s32.totalorder %s148, %s162
      %p164 = scmp.eq.s32.totalorder %s28, 0
      %p165 = por %p163, %p164
      %s166 = ssub.s32 %s22, %s29
      %p167 = scmp.eq.s32.totalorder %s166, 0
      %s169 = sadd.s32 %s168, 1
      %s170 = scalar_select %p167, %s168, %s169
      %p173 = pneg %p167
      %p174 = scmp.eq.s32.totalorder %s22, 1
      %p175 = por %p173, %p174
      %p176 = scmp.ne.s32.totalorder %s168, %s171
      %p177 = scmp.eq.s32.totalorder %s22, 0
      %p178 = por %p176, %p177
      %p179 = scmp.ne.s32.totalorder %s168, %s171
      %p180 = scmp.eq.s32.totalorder %s27, 1
      %p181 = por %p179, %p180
      %p182 = scmp.ne.s32.totalorder %s171, %s172
      %p183 = scmp.eq.s32.totalorder %s27, 0
      %p184 = por %p182, %p183
      %p185 = scmp.ne.s32.totalorder %s171, %s172
      %p186 = scmp.eq.s32.totalorder %s28, 1
      %p187 = por %p185, %p186
      %p189 = scmp.ne.s32.totalorder %s172, %s188
      %p190 = scmp.eq.s32.totalorder %s28, 0
      %p191 = por %p189, %p190
      %p192 = scmp.le.s32.totalorder 1, %s22
      %p193 = scmp.lt.s32.totalorder %s22, 3
      %p194 = pnand %p192, %p193
      %p195 = pneg %p194
      // Predicated region
      $region9: #{tpu_custom_call.1} parent=5 // pred_check
        _
      $region10: #{tpu_custom_call.1} parent=5 // pred_check_branch
        %197 = sbr.rel (%p194) target = $region12
      $region11: #{tpu_custom_call.1} parent=5 // pred_region
        %s198 = ssub.s32 %s22, 1
        // Predicated region
        $region13: #{tpu_custom_call.1} parent=11 // pred_check
          %p199 = pneg %p95
        $region14: #{tpu_custom_call.1} parent=11 // pred_check_branch
          %201 = sbr.rel (%p199) target = $region16
        $region15: #{tpu_custom_call.1} parent=11 // pred_region
          %s203 = ssub.s32 512, 512
          %204 = vsyncadd [#allocation6], %s203
          %s205 = sshll.u32 [#allocation7], 4
          %s206 = int_to_ptr.vmem [resolvable:$true] %s205
          %211 = dma.hbm_to_vmem [thread:$0]  %s2, 512, %s206, [#allocation6], 256, 256, 16
        $region16: #{tpu_custom_call.1} parent=11 // pred_fallthru
          _
        // Predicated region
        $region17: #{tpu_custom_call.1} parent=11 // pred_check
          %p212 = pneg %p116
        $region18: #{tpu_custom_call.1} parent=11 // pred_check_branch
          %214 = sbr.rel (%p212) target = $region20
        $region19: #{tpu_custom_call.1} parent=11 // pred_region
          %s216 = ssub.s32 8192, 8192
          %217 = vsyncadd [#allocation9], %s216
          %s218 = sshll.u32 [#allocation8], 4
          %s219 = int_to_ptr.vmem [resolvable:$true] %s218
          %224 = dma.hbm_to_vmem [thread:$0]  %s3, 8192, %s219, [#allocation9], 256, 256, 16
        $region20: #{tpu_custom_call.1} parent=11 // pred_fallthru
          _
        // Predicated region
        $region21: #{tpu_custom_call.1} parent=11 // pred_check
          %p225 = pneg %p137
        $region22: #{tpu_custom_call.1} parent=11 // pred_check_branch
          %227 = sbr.rel (%p225) target = $region24
        $region23: #{tpu_custom_call.1} parent=11 // pred_region
          %s229 = ssub.s32 8192, 8192
          %230 = vsyncadd [#allocation9], %s229
          %s231 = sshll.u32 [#allocation10], 4
          %s232 = int_to_ptr.vmem [resolvable:$true] %s231
          %237 = dma.hbm_to_vmem [thread:$0]  %s4, 8192, %s232, [#allocation9], 256, 256, 16
        $region24: #{tpu_custom_call.1} parent=11 // pred_fallthru
          _
        // Predicated region
        $region25: #{tpu_custom_call.1} parent=11 // pred_check
          %p238 = pneg %p158
        $region26: #{tpu_custom_call.1} parent=11 // pred_check_branch
          %240 = sbr.rel (%p238) target = $region28
        $region27: #{tpu_custom_call.1} parent=11 // pred_region
          _
        $region28: #{tpu_custom_call.1} parent=11 // pred_fallthru
          _
      $region12: #{tpu_custom_call.1} parent=5 // pred_fallthru
        _
      %p241 = scmp.lt.s32.totalorder %s22, 2
      // Predicated region
      $region29: #{tpu_custom_call.1} parent=5 // pred_check
        %p242 = pneg %p241
      $region30: #{tpu_custom_call.1} parent=5 // pred_check_branch
        %244 = sbr.rel (%p242) target = $region32
      $region31: #{tpu_custom_call.1} parent=5 // pred_region
        // Predicated region
        $region33: #{tpu_custom_call.1} parent=31 // pred_check
          %p245 = pneg %p42
        $region34: #{tpu_custom_call.1} parent=31 // pred_check_branch
          %247 = sbr.rel (%p245) target = $region36
        $region35: #{tpu_custom_call.1} parent=31 // pred_region
          %s248 = sand.u32 %s32, 1
          %s249 = scalar_lea.sflag [#allocation3], %s248
          %s250 = sand.u32 %s32, 1
          %s251 = smul.addr %s250, 8
          %s252 = scalar_lea.vmem [#allocation2], %s251
          %s254 = ssub.s32 128, 128
          %255 = vsyncadd %s249, %s254
          %s256 = smul.addr %s22, 128
          %s257 = scalar_lea.hbm %s0, %s256
          %s259 = sshll.u32 %s252, 4
          %s260 = int_to_ptr.vmem [resolvable:$true] %s259
          %262 = dma.hbm_to_vmem [thread:$0]  %s257, 128, %s260, %s249
        $region36: #{tpu_custom_call.1} parent=31 // pred_fallthru
          _
        // Predicated region
        $region37: #{tpu_custom_call.1} parent=31 // pred_check
          %p263 = pneg %p68
        $region38: #{tpu_custom_call.1} parent=31 // pred_check_branch
          %265 = sbr.rel (%p263) target = $region40
        $region39: #{tpu_custom_call.1} parent=31 // pred_region
          %s266 = sand.u32 %s22, 1
          %s267 = scalar_lea.sflag [#allocation6], %s266
          %s268 = sand.u32 %s58, 1
          %s269 = smul.addr %s268, 8
          %s270 = scalar_lea.vmem [#allocation5], %s269
          %s272 = ssub.s32 128, 128
          %273 = vsyncadd %s267, %s272
          %s274 = smul.addr %s22, 128
          %s275 = scalar_lea.hbm %s1, %s274
          %s277 = sshll.u32 %s270, 4
          %s278 = int_to_ptr.vmem [resolvable:$true] %s277
          %280 = dma.hbm_to_vmem [thread:$0]  %s275, 128, %s278, %s267
        $region40: #{tpu_custom_call.1} parent=31 // pred_fallthru
          _
      $region32: #{tpu_custom_call.1} parent=5 // pred_fallthru
        _
      %p281 = scmp.le.s32.totalorder 1, %s22
      %p282 = scmp.lt.s32.totalorder %s22, 3
      %p283 = pnand %p281, %p282
      %p284 = pneg %p283
      // Predicated region
      $region41: #{tpu_custom_call.1} parent=5 // pred_check
        _
      $region42: #{tpu_custom_call.1} parent=5 // pred_check_branch
        %286 = sbr.rel (%p283) target = $region44
      $region43: #{tpu_custom_call.1} parent=5 // pred_region
        %s287 = ssub.s32 %s22, 1
        %s288 = sand.u32 %s35, 1
        %s289 = scalar_lea.sflag [#allocation3], %s288
        %s290 = sand.u32 %s35, 1
        %s291 = smul.addr %s290, 8
        %s292 = scalar_lea.vmem [#allocation2], %s291
        // Predicated region
        $region45: #{tpu_custom_call.1} parent=43 // pred_check
          %p293 = pneg %p48
        $region46: #{tpu_custom_call.1} parent=43 // pred_check_branch
          %295 = sbr.rel (%p293) target = $region48
        $region47: #{tpu_custom_call.1} parent=43 // pred_region
          %296 = dma.done %s289, 128
        $region48: #{tpu_custom_call.1} parent=43 // pred_fallthru
          _
        %s297 = sand.u32 %s27, 1
        %s298 = scalar_lea.sflag [#allocation6], %s297
        %s299 = sand.u32 %s61, 1
        %s300 = smul.addr %s299, 8
        %s301 = scalar_lea.vmem [#allocation5], %s300
        // Predicated region
        $region49: #{tpu_custom_call.1} parent=43 // pred_check
          %p302 = pneg %p74
        $region50: #{tpu_custom_call.1} parent=43 // pred_check_branch
          %304 = sbr.rel (%p302) target = $region52
        $region51: #{tpu_custom_call.1} parent=43 // pred_region
          %305 = dma.done %s298, 128
        $region52: #{tpu_custom_call.1} parent=43 // pred_fallthru
          _
        // Predicated region
        $region53: #{tpu_custom_call.1} parent=43 // pred_check
          %p306 = pneg %p95
        $region54: #{tpu_custom_call.1} parent=43 // pred_check_branch
          %308 = sbr.rel (%p306) target = $region56
        $region55: #{tpu_custom_call.1} parent=43 // pred_region
          %309 = dma.done [#allocation6], 512
        $region56: #{tpu_custom_call.1} parent=43 // pred_fallthru
          _
        // Predicated region
        $region57: #{tpu_custom_call.1} parent=43 // pred_check
          %p310 = pneg %p116
        $region58: #{tpu_custom_call.1} parent=43 // pred_check_branch
          %312 = sbr.rel (%p310) target = $region60
        $region59: #{tpu_custom_call.1} parent=43 // pred_region
          %313 = dma.done [#allocation9], 8192
        $region60: #{tpu_custom_call.1} parent=43 // pred_fallthru
          _
        // Predicated region
        $region61: #{tpu_custom_call.1} parent=43 // pred_check
          %p314 = pneg %p137
        $region62: #{tpu_custom_call.1} parent=43 // pred_check_branch
          %316 = sbr.rel (%p314) target = $region64
        $region63: #{tpu_custom_call.1} parent=43 // pred_region
          %317 = dma.done [#allocation9], 8192
        $region64: #{tpu_custom_call.1} parent=43 // pred_fallthru
          _
        %s318 = sand.u32 %s35, 1
        %s319 = scalar_lea.sflag [#allocation3], %s318
        %s320 = sand.u32 %s35, 1
        %s321 = smul.addr %s320, 8
        %s322 = scalar_lea.vmem [#allocation2], %s321
        %p323 = pneg %p48
        %p324 = pneg %p45
        %s325 = sand.u32 %s27, 1
        %s326 = scalar_lea.sflag [#allocation6], %s325
        %s327 = sand.u32 %s61, 1
        %s328 = smul.addr %s327, 8
        %s329 = scalar_lea.vmem [#allocation5], %s328
        %p330 = pneg %p74
        %p331 = pneg %p71
        %p332 = pneg %p95
        %p333 = pneg %p92
        %p334 = pneg %p116
        %p335 = pneg %p113
        %p336 = pneg %p137
        %p337 = pneg %p134
        %p338 = pneg %p158
        %p339 = pneg %p155
        %p340 = pneg %p184
        %p341 = pneg %p181
        %s342 = sand.u32 %s171, 1
        %s343 = scalar_lea.sflag [#allocation4], %s342
        %s344 = sand.u32 %s171, 1
        %s345 = smul.addr %s344, 16
        %s346 = scalar_lea.vmem [#allocation11], %s345
        %v347 = vld [vmem:[%s301] sm:$0xff]
        %v348 = vld [vmem:[%s292] sm:$0xff]
        %vm349 = vcmask 64512
        %v351 = vsel %vm349, %v348, 0
        %353 = vmatprep.subr.mxu0 0.0
        %354 = vmatpush1.msra.mxu0 %v347
        %355 = vmatprep.subr.mxu0 0.0
        %356 = vmatpush1.msra.mxu0 0.0
        %357 = vmatprep.subr.mxu0 0.0
        %358 = vmatpush1.msra.mxu0 0.0
        %359 = vmatprep.subr.mxu0 0.0
        %360 = vmatpush1.msra.mxu0 0.0
        %361 = vmatprep.subr.mxu0 0.0
        %362 = vmatpush1.msra.mxu0 0.0
        %363 = vmatprep.subr.mxu0 0.0
        %364 = vmatpush1.msra.mxu0 0.0
        %365 = vmatprep.subr.mxu0 0.0
        %366 = vmatpush1.msra.mxu0 0.0
        %367 = vmatprep.subr.mxu0 0.0
        %368 = vmatpush1.msra.mxu0 0.0
        %369 = vmatprep.subr.mxu0 0.0
        %370 = vmatpush1.msra.mxu0 0.0
        %371 = vmatprep.subr.mxu0 0.0
        %372 = vmatpush1.msra.mxu0 0.0
        %373 = vmatprep.subr.mxu0 0.0
        %374 = vmatpush1.msra.mxu0 0.0
        %375 = vmatprep.subr.mxu0 0.0
        %376 = vmatpush1.msra.mxu0 0.0
        %377 = vmatprep.subr.mxu0 0.0
        %378 = vmatpush1.msra.mxu0 0.0
        %379 = vmatprep.subr.mxu0 0.0
        %380 = vmatpush1.msra.mxu0 0.0
        %381 = vmatprep.subr.mxu0 0.0
        %382 = vmatpush1.msra.mxu0 0.0
        %383 = vmatprep.subr.mxu0 0.0
        %384 = vmatpush1.msra.mxu0 0.0
        %385 = vmatprep.subr.mxu0 0.0
        %386 = vmatpush1.msra.mxu0 0.0
        %387 = vmatprep.subr.mxu0 0.0
        %388 = vmatpush1.msra.mxu0 0.0
        %389 = vmatprep.subr.mxu0 0.0
        %390 = vmatpush1.msra.mxu0 0.0
        %391 = vmatprep.subr.mxu0 0.0
        %392 = vmatpush1.msra.mxu0 0.0
        %393 = vmatprep.subr.mxu0 0.0
        %394 = vmatpush1.msra.mxu0 0.0
        %395 = vmatprep.subr.mxu0 0.0
        %396 = vmatpush1.msra.mxu0 0.0
        %397 = vmatprep.subr.mxu0 0.0
        %398 = vmatpush1.msra.mxu0 0.0
        %399 = vmatprep.subr.mxu0 0.0
        %400 = vmatpush1.msra.mxu0 0.0
        %401 = vmatprep.subr.mxu0 0.0
        %402 = vmatpush1.msra.mxu0 0.0
        %403 = vmatprep.subr.mxu0 0.0
        %404 = vmatpush1.msra.mxu0 0.0
        %405 = vmatprep.subr.mxu0 0.0
        %406 = vmatpush1.msra.mxu0 0.0
        %407 = vmatprep.subr.mxu0 0.0
        %408 = vmatpush1.msra.mxu0 0.0
        %409 = vmatprep.subr.mxu0 0.0
        %410 = vmatpush1.msra.mxu0 0.0
        %411 = vmatprep.subr.mxu0 0.0
        %412 = vmatpush1.msra.mxu0 0.0
        %413 = vmatprep.subr.mxu0 0.0
        %414 = vmatpush1.msra.mxu0 0.0
        %415 = vmatprep.subr.mxu0 0.0
        %416 = vmatpush1.msra.mxu0 0.0
        %417 = vmatprep.mubr.f32.mxu0 0.0
        %418 = vmatmul.mubr.f32.gmra.mrb[0].mxu0 %v351
        %v419 = vpop.f32.mrb[0].mxu0
        %v420 = vadd.f32 0.0, %v419
        %v421 = vpop.f32.mrb[0].mxu0
        %422 = vdwg.mxu0
        %v423 = vld [vmem:[#allocation7] sm:$0xff]
        %v424 = vld [vmem:[#allocation7 + $0x8] sm:$0xff]
        %v425 = vld [vmem:[#allocation7 + $0x10] sm:$0x1]
        %v426 = vld [vmem:[#allocation7 + $0x18] sm:$0x1]
        %vm427 = vcmask 72704
        %v429 = vsel %vm427, %v420, 0
        %vm431 = vcmask 1040384
        %v433 = vsel %vm431, %v425, 0
        %v436 = vsel %vm431, %v426, 0
        %438 = vmatprep.subr.mxu0 %v424
        %439 = vmatpush1.msra.mxu0 %v423
        %440 = vmatprep.subr.mxu0 %v436
        %441 = vmatpush1.msra.mxu0 %v433
        %442 = vmatprep.subr.mxu0 0.0
        %443 = vmatpush1.msra.mxu0 0.0
        %444 = vmatprep.subr.mxu0 0.0
        %445 = vmatpush1.msra.mxu0 0.0
        %446 = vmatprep.subr.mxu0 0.0
        %447 = vmatpush1.msra.mxu0 0.0
        %448 = vmatprep.subr.mxu0 0.0
        %449 = vmatpush1.msra.mxu0 0.0
        %450 = vmatprep.subr.mxu0 0.0
        %451 = vmatpush1.msra.mxu0 0.0
        %452 = vmatprep.subr.mxu0 0.0
        %453 = vmatpush1.msra.mxu0 0.0
        %454 = vmatprep.subr.mxu0 0.0
        %455 = vmatpush1.msra.mxu0 0.0
        %456 = vmatprep.subr.mxu0 0.0
        %457 = vmatpush1.msra.mxu0 0.0
        %458 = vmatprep.subr.mxu0 0.0
        %459 = vmatpush1.msra.mxu0 0.0
        %460 = vmatprep.subr.mxu0 0.0
        %461 = vmatpush1.msra.mxu0 0.0
        %462 = vmatprep.subr.mxu0 0.0
        %463 = vmatpush1.msra.mxu0 0.0
        %464 = vmatprep.subr.mxu0 0.0
        %465 = vmatpush1.msra.mxu0 0.0
        %466 = vmatprep.subr.mxu0 0.0
        %467 = vmatpush1.msra.mxu0 0.0
        %468 = vmatprep.subr.mxu0 0.0
        %469 = vmatpush1.msra.mxu0 0.0
        %470 = vmatprep.subr.mxu0 0.0
        %471 = vmatpush1.msra.mxu0 0.0
        %472 = vmatprep.subr.mxu0 0.0
        %473 = vmatpush1.msra.mxu0 0.0
        %474 = vmatprep.subr.mxu0 0.0
        %475 = vmatpush1.msra.mxu0 0.0
        %476 = vmatprep.subr.mxu0 0.0
        %477 = vmatpush1.msra.mxu0 0.0
        %478 = vmatprep.subr.mxu0 0.0
        %479 = vmatpush1.msra.mxu0 0.0
        %480 = vmatprep.subr.mxu0 0.0
        %481 = vmatpush1.msra.mxu0 0.0
        %482 = vmatprep.subr.mxu0 0.0
        %483 = vmatpush1.msra.mxu0 0.0
        %484 = vmatprep.subr.mxu0 0.0
        %485 = vmatpush1.msra.mxu0 0.0
        %486 = vmatprep.subr.mxu0 0.0
        %487 = vmatpush1.msra.mxu0 0.0
        %488 = vmatprep.subr.mxu0 0.0
        %489 = vmatpush1.msra.mxu0 0.0
        %490 = vmatprep.subr.mxu0 0.0
        %491 = vmatpush1.msra.mxu0 0.0
        %492 = vmatprep.subr.mxu0 0.0
        %493 = vmatpush1.msra.mxu0 0.0
        %494 = vmatprep.subr.mxu0 0.0
        %495 = vmatpush1.msra.mxu0 0.0
        %496 = vmatprep.subr.mxu0 0.0
        %497 = vmatpush1.msra.mxu0 0.0
        %498 = vmatprep.subr.mxu0 0.0
        %499 = vmatpush1.msra.mxu0 0.0
        %500 = vmatprep.subr.mxu0 0.0
        %501 = vmatpush1.msra.mxu0 0.0
        %502 = vmatprep.mubr.f32.mxu0 0.0
        %503 = vmatmul.mubr.f32.gmra.mrb[0].mxu0 %v429
        %v504 = vpop.f32.mrb[0].mxu0
        %v505 = vadd.f32 0.0, %v504
        %v506 = vpop.f32.mrb[0].mxu0
        %v507 = vadd.f32 0.0, %v506
        %508 = vdwg.mxu0
        %v509 = vld [vmem:[#allocation8] sm:$0xff]
        %v510 = vld [vmem:[#allocation8 + $0x8] sm:$0xff]
        %v511 = vld [vmem:[#allocation8 + $0x10] sm:$0xff]
        %v512 = vld [vmem:[#allocation8 + $0x18] sm:$0xff]
        %v513 = vld [vmem:[#allocation8 + $0x20] sm:$0xff]
        %v514 = vld [vmem:[#allocation8 + $0x28] sm:$0xff]
        %v515 = vld [vmem:[#allocation8 + $0x30] sm:$0xff]
        %v516 = vld [vmem:[#allocation8 + $0x38] sm:$0xff]
        %v517 = vld [vmem:[#allocation8 + $0x40] sm:$0xff]
        %v518 = vld [vmem:[#allocation8 + $0x48] sm:$0xff]
        %v519 = vld [vmem:[#allocation8 + $0x50] sm:$0xff]
        %v520 = vld [vmem:[#allocation8 + $0x58] sm:$0xff]
        %v521 = vld [vmem:[#allocation8 + $0x60] sm:$0xff]
        %v522 = vld [vmem:[#allocation8 + $0x68] sm:$0xff]
        %v523 = vld [vmem:[#allocation8 + $0x70] sm:$0xff]
        %v524 = vld [vmem:[#allocation8 + $0x78] sm:$0xff]
        %v525 = vld [vmem:[#allocation8 + $0x80] sm:$0xff]
        %v526 = vld [vmem:[#allocation8 + $0x88] sm:$0xff]
        %v527 = vld [vmem:[#allocation8 + $0x90] sm:$0xff]
        %v528 = vld [vmem:[#allocation8 + $0x98] sm:$0xff]
        %v529 = vld [vmem:[#allocation8 + $0xa0] sm:$0xff]
        %v530 = vld [vmem:[#allocation8 + $0xa8] sm:$0xff]
        %v531 = vld [vmem:[#allocation8 + $0xb0] sm:$0xff]
        %v532 = vld [vmem:[#allocation8 + $0xb8] sm:$0xff]
        %v533 = vld [vmem:[#allocation8 + $0xc0] sm:$0xff]
        %v534 = vld [vmem:[#allocation8 + $0xc8] sm:$0xff]
        %v535 = vld [vmem:[#allocation8 + $0xd0] sm:$0xff]
        %v536 = vld [vmem:[#allocation8 + $0xd8] sm:$0xff]
        %v537 = vld [vmem:[#allocation8 + $0xe0] sm:$0xff]
        %v538 = vld [vmem:[#allocation8 + $0xe8] sm:$0xff]
        %v539 = vld [vmem:[#allocation8 + $0xf0] sm:$0xff]
        %v540 = vld [vmem:[#allocation8 + $0xf8] sm:$0xff]
        %v541 = vld [vmem:[#allocation8 + $0x100] sm:$0xff]
        %v542 = vld [vmem:[#allocation8 + $0x108] sm:$0xff]
        %v543 = vld [vmem:[#allocation8 + $0x110] sm:$0xff]
        %v544 = vld [vmem:[#allocation8 + $0x118] sm:$0xff]
        %v545 = vld [vmem:[#allocation8 + $0x120] sm:$0xff]
        %v546 = vld [vmem:[#allocation8 + $0x128] sm:$0xff]
        %v547 = vld [vmem:[#allocation8 + $0x130] sm:$0xff]
        %v548 = vld [vmem:[#allocation8 + $0x138] sm:$0xff]
        %v549 = vld [vmem:[#allocation8 + $0x140] sm:$0xff]
        %v550 = vld [vmem:[#allocation8 + $0x148] sm:$0xff]
        %v551 = vld [vmem:[#allocation8 + $0x150] sm:$0xff]
        %v552 = vld [vmem:[#allocation8 + $0x158] sm:$0xff]
        %v553 = vld [vmem:[#allocation8 + $0x160] sm:$0xff]
        %v554 = vld [vmem:[#allocation8 + $0x168] sm:$0xff]
        %v555 = vld [vmem:[#allocation8 + $0x170] sm:$0xff]
        %v556 = vld [vmem:[#allocation8 + $0x178] sm:$0xff]
        %v557 = vld [vmem:[#allocation8 + $0x180] sm:$0xff]
        %v558 = vld [vmem:[#allocation8 + $0x188] sm:$0xff]
        %v559 = vld [vmem:[#allocation8 + $0x190] sm:$0xff]
        %v560 = vld [vmem:[#allocation8 + $0x198] sm:$0xff]
        %v561 = vld [vmem:[#allocation8 + $0x1a0] sm:$0xff]
        %v562 = vld [vmem:[#allocation8 + $0x1a8] sm:$0xff]
        %v563 = vld [vmem:[#allocation8 + $0x1b0] sm:$0xff]
        %v564 = vld [vmem:[#allocation8 + $0x1b8] sm:$0xff]
        %v565 = vld [vmem:[#allocation8 + $0x1c0] sm:$0xff]
        %v566 = vld [vmem:[#allocation8 + $0x1c8] sm:$0xff]
        %v567 = vld [vmem:[#allocation8 + $0x1d0] sm:$0xff]
        %v568 = vld [vmem:[#allocation8 + $0x1d8] sm:$0xff]
        %v569 = vld [vmem:[#allocation8 + $0x1e0] sm:$0xff]
        %v570 = vld [vmem:[#allocation8 + $0x1e8] sm:$0xff]
        %v571 = vld [vmem:[#allocation8 + $0x1f0] sm:$0xff]
        %v572 = vld [vmem:[#allocation8 + $0x1f8] sm:$0xff]
        %573 = vmatprep.subr.mxu0 %v510
        %574 = vmatpush1.msra.mxu0 %v509
        %575 = vmatprep.subr.mxu0 %v512
        %576 = vmatpush1.msra.mxu0 %v511
        %577 = vmatprep.subr.mxu0 %v514
        %578 = vmatpush1.msra.mxu0 %v513
        %579 = vmatprep.subr.mxu0 %v516
        %580 = vmatpush1.msra.mxu0 %v515
        %581 = vmatprep.subr.mxu0 %v518
        %582 = vmatpush1.msra.mxu0 %v517
        %583 = vmatprep.subr.mxu0 %v520
        %584 = vmatpush1.msra.mxu0 %v519
        %585 = vmatprep.subr.mxu0 %v522
        %586 = vmatpush1.msra.mxu0 %v521
        %587 = vmatprep.subr.mxu0 %v524
        %588 = vmatpush1.msra.mxu0 %v523
        %589 = vmatprep.subr.mxu0 %v526
        %590 = vmatpush1.msra.mxu0 %v525
        %591 = vmatprep.subr.mxu0 %v528
        %592 = vmatpush1.msra.mxu0 %v527
        %593 = vmatprep.subr.mxu0 %v530
        %594 = vmatpush1.msra.mxu0 %v529
        %595 = vmatprep.subr.mxu0 %v532
        %596 = vmatpush1.msra.mxu0 %v531
        %597 = vmatprep.subr.mxu0 %v534
        %598 = vmatpush1.msra.mxu0 %v533
        %599 = vmatprep.subr.mxu0 %v536
        %600 = vmatpush1.msra.mxu0 %v535
        %601 = vmatprep.subr.mxu0 %v538
        %602 = vmatpush1.msra.mxu0 %v537
        %603 = vmatprep.subr.mxu0 %v540
        %604 = vmatpush1.msra.mxu0 %v539
        %605 = vmatprep.subr.mxu0 %v542
        %606 = vmatpush1.msra.mxu0 %v541
        %607 = vmatprep.subr.mxu0 %v544
        %608 = vmatpush1.msra.mxu0 %v543
        %609 = vmatprep.subr.mxu0 %v546
        %610 = vmatpush1.msra.mxu0 %v545
        %611 = vmatprep.subr.mxu0 %v548
        %612 = vmatpush1.msra.mxu0 %v547
        %613 = vmatprep.subr.mxu0 %v550
        %614 = vmatpush1.msra.mxu0 %v549
        %615 = vmatprep.subr.mxu0 %v552
        %616 = vmatpush1.msra.mxu0 %v551
        %617 = vmatprep.subr.mxu0 %v554
        %618 = vmatpush1.msra.mxu0 %v553
        %619 = vmatprep.subr.mxu0 %v556
        %620 = vmatpush1.msra.mxu0 %v555
        %621 = vmatprep.subr.mxu0 %v558
        %622 = vmatpush1.msra.mxu0 %v557
        %623 = vmatprep.subr.mxu0 %v560
        %624 = vmatpush1.msra.mxu0 %v559
        %625 = vmatprep.subr.mxu0 %v562
        %626 = vmatpush1.msra.mxu0 %v561
        %627 = vmatprep.subr.mxu0 %v564
        %628 = vmatpush1.msra.mxu0 %v563
        %629 = vmatprep.subr.mxu0 %v566
        %630 = vmatpush1.msra.mxu0 %v565
        %631 = vmatprep.subr.mxu0 %v568
        %632 = vmatpush1.msra.mxu0 %v567
        %633 = vmatprep.subr.mxu0 %v570
        %634 = vmatpush1.msra.mxu0 %v569
        %635 = vmatprep.subr.mxu0 %v572
        %636 = vmatpush1.msra.mxu0 %v571
        %637 = vmatprep.mubr.f32.mxu0 %v507
        %638 = vmatmul.mubr.f32.gmra.mrb[0].mxu0 %v505
        %v639 = vpop.f32.mrb[0].mxu0
        %v640 = vadd.f32 0.0, %v639
        %v641 = vpop.f32.mrb[0].mxu0
        %v642 = vadd.f32 0.0, %v641
        %643 = vdwg.mxu0
        %v644 = vmul.f32 %v505, %v505
        %v645 = vmul.f32 %v507, %v507
        %646 = vmatprep.subr.mxu0 %v510
        %647 = vmatpush1.msra.mxu0 %v509
        %648 = vmatprep.subr.mxu0 %v512
        %649 = vmatpush1.msra.mxu0 %v511
        %650 = vmatprep.subr.mxu0 %v514
        %651 = vmatpush1.msra.mxu0 %v513
        %652 = vmatprep.subr.mxu0 %v516
        %653 = vmatpush1.msra.mxu0 %v515
        %654 = vmatprep.subr.mxu0 %v518
        %655 = vmatpush1.msra.mxu0 %v517
        %656 = vmatprep.subr.mxu0 %v520
        %657 = vmatpush1.msra.mxu0 %v519
        %658 = vmatprep.subr.mxu0 %v522
        %659 = vmatpush1.msra.mxu0 %v521
        %660 = vmatprep.subr.mxu0 %v524
        %661 = vmatpush1.msra.mxu0 %v523
        %662 = vmatprep.subr.mxu0 %v526
        %663 = vmatpush1.msra.mxu0 %v525
        %664 = vmatprep.subr.mxu0 %v528
        %665 = vmatpush1.msra.mxu0 %v527
        %666 = vmatprep.subr.mxu0 %v530
        %667 = vmatpush1.msra.mxu0 %v529
        %668 = vmatprep.subr.mxu0 %v532
        %669 = vmatpush1.msra.mxu0 %v531
        %670 = vmatprep.subr.mxu0 %v534
        %671 = vmatpush1.msra.mxu0 %v533
        %672 = vmatprep.subr.mxu0 %v536
        %673 = vmatpush1.msra.mxu0 %v535
        %674 = vmatprep.subr.mxu0 %v538
        %675 = vmatpush1.msra.mxu0 %v537
        %676 = vmatprep.subr.mxu0 %v540
        %677 = vmatpush1.msra.mxu0 %v539
        %678 = vmatprep.subr.mxu0 %v542
        %679 = vmatpush1.msra.mxu0 %v541
        %680 = vmatprep.subr.mxu0 %v544
        %681 = vmatpush1.msra.mxu0 %v543
        %682 = vmatprep.subr.mxu0 %v546
        %683 = vmatpush1.msra.mxu0 %v545
        %684 = vmatprep.subr.mxu0 %v548
        %685 = vmatpush1.msra.mxu0 %v547
        %686 = vmatprep.subr.mxu0 %v550
        %687 = vmatpush1.msra.mxu0 %v549
        %688 = vmatprep.subr.mxu0 %v552
        %689 = vmatpush1.msra.mxu0 %v551
        %690 = vmatprep.subr.mxu0 %v554
        %691 = vmatpush1.msra.mxu0 %v553
        %692 = vmatprep.subr.mxu0 %v556
        %693 = vmatpush1.msra.mxu0 %v555
        %694 = vmatprep.subr.mxu0 %v558
        %695 = vmatpush1.msra.mxu0 %v557
        %696 = vmatprep.subr.mxu0 %v560
        %697 = vmatpush1.msra.mxu0 %v559
        %698 = vmatprep.subr.mxu0 %v562
        %699 = vmatpush1.msra.mxu0 %v561
        %700 = vmatprep.subr.mxu0 %v564
        %701 = vmatpush1.msra.mxu0 %v563
        %702 = vmatprep.subr.mxu0 %v566
        %703 = vmatpush1.msra.mxu0 %v565
        %704 = vmatprep.subr.mxu0 %v568
        %705 = vmatpush1.msra.mxu0 %v567
        %706 = vmatprep.subr.mxu0 %v570
        %707 = vmatpush1.msra.mxu0 %v569
        %708 = vmatprep.subr.mxu0 %v572
        %709 = vmatpush1.msra.mxu0 %v571
        %710 = vmatprep.mubr.f32.mxu0 %v645
        %711 = vmatmul.mubr.f32.gmra.mrb[0].mxu0 %v644
        %v712 = vpop.f32.mrb[0].mxu0
        %v713 = vadd.f32 0.0, %v712
        %v714 = vpop.f32.mrb[0].mxu0
        %v715 = vadd.f32 0.0, %v714
        %716 = vdwg.mxu0
        %v717 = vmul.f32 %v640, %v640
        %v718 = vmul.f32 %v642, %v642
        %v719 = vsub.f32 %v713, %v717
        %v720 = vsub.f32 %v715, %v718
        %v721 = vld [vmem:[%s5] ss:$4 sm:$0x3]
        %s722 = scalar_lea.vmem %s5, 1
        %v723 = vld [vmem:[%s722] ss:$4 sm:$0x3]
        %s724 = scalar_lea.vmem %s5, 2
        %v725 = vld [vmem:[%s724] ss:$4 sm:$0x3]
        %v726 = vsub.f32 %v505, %v640
        %v727 = vsub.f32 %v507, %v642
        %v728 = vadd.f32 %v719, 1e-05
        %v729 = vadd.f32 %v720, 1e-05
        %v730 = vrsqrt.pop %v728
        %v731 = vrsqrt.pop %v729
        %v732 = vmul.f32 %v726, %v730
        %v733 = vmul.f32 %v727, %v731
        %v735 = vlaneseq
        %v736 = vshrl.u32 %v735, 7
        %v737 = vsub.s32 0, %v736
        %v738 = vrot.slane %v721, %v737
        %v739 = vlaneseq
        %v740 = vshrl.u32 %v739, 7
        %v741 = vsub.s32 1, %v740
        %v742 = vrot.slane %v721, %v741
        %v745 = vmul.f32 %v732, %v738
        %v746 = vmul.f32 %v733, %v742
        %v748 = vlaneseq
        %v749 = vshrl.u32 %v748, 7
        %v750 = vsub.s32 0, %v749
        %v751 = vrot.slane %v723, %v750
        %v752 = vlaneseq
        %v753 = vshrl.u32 %v752, 7
        %v754 = vsub.s32 1, %v753
        %v755 = vrot.slane %v723, %v754
        %v758 = vadd.f32 %v745, %v751
        %v759 = vadd.f32 %v746, %v755
        %v760 = vld [vmem:[#allocation10] sm:$0xff]
        %v761 = vld [vmem:[#allocation10 + $0x8] sm:$0xff]
        %v762 = vld [vmem:[#allocation10 + $0x10] sm:$0xff]
        %v763 = vld [vmem:[#allocation10 + $0x18] sm:$0xff]
        %v764 = vld [vmem:[#allocation10 + $0x20] sm:$0xff]
        %v765 = vld [vmem:[#allocation10 + $0x28] sm:$0xff]
        %v766 = vld [vmem:[#allocation10 + $0x30] sm:$0xff]
        %v767 = vld [vmem:[#allocation10 + $0x38] sm:$0xff]
        %v768 = vld [vmem:[#allocation10 + $0x40] sm:$0xff]
        %v769 = vld [vmem:[#allocation10 + $0x48] sm:$0xff]
        %v770 = vld [vmem:[#allocation10 + $0x50] sm:$0xff]
        %v771 = vld [vmem:[#allocation10 + $0x58] sm:$0xff]
        %v772 = vld [vmem:[#allocation10 + $0x60] sm:$0xff]
        %v773 = vld [vmem:[#allocation10 + $0x68] sm:$0xff]
        %v774 = vld [vmem:[#allocation10 + $0x70] sm:$0xff]
        %v775 = vld [vmem:[#allocation10 + $0x78] sm:$0xff]
        %v776 = vld [vmem:[#allocation10 + $0x80] sm:$0xff]
        %v777 = vld [vmem:[#allocation10 + $0x88] sm:$0xff]
        %v778 = vld [vmem:[#allocation10 + $0x90] sm:$0xff]
        %v779 = vld [vmem:[#allocation10 + $0x98] sm:$0xff]
        %v780 = vld [vmem:[#allocation10 + $0xa0] sm:$0xff]
        %v781 = vld [vmem:[#allocation10 + $0xa8] sm:$0xff]
        %v782 = vld [vmem:[#allocation10 + $0xb0] sm:$0xff]
        %v783 = vld [vmem:[#allocation10 + $0xb8] sm:$0xff]
        %v784 = vld [vmem:[#allocation10 + $0xc0] sm:$0xff]
        %v785 = vld [vmem:[#allocation10 + $0xc8] sm:$0xff]
        %v786 = vld [vmem:[#allocation10 + $0xd0] sm:$0xff]
        %v787 = vld [vmem:[#allocation10 + $0xd8] sm:$0xff]
        %v788 = vld [vmem:[#allocation10 + $0xe0] sm:$0xff]
        %v789 = vld [vmem:[#allocation10 + $0xe8] sm:$0xff]
        %v790 = vld [vmem:[#allocation10 + $0xf0] sm:$0xff]
        %v791 = vld [vmem:[#allocation10 + $0xf8] sm:$0xff]
        %v792 = vld [vmem:[#allocation10 + $0x100] sm:$0xff]
        %v793 = vld [vmem:[#allocation10 + $0x108] sm:$0xff]
        %v794 = vld [vmem:[#allocation10 + $0x110] sm:$0xff]
        %v795 = vld [vmem:[#allocation10 + $0x118] sm:$0xff]
        %v796 = vld [vmem:[#allocation10 + $0x120] sm:$0xff]
        %v797 = vld [vmem:[#allocation10 + $0x128] sm:$0xff]
        %v798 = vld [vmem:[#allocation10 + $0x130] sm:$0xff]
        %v799 = vld [vmem:[#allocation10 + $0x138] sm:$0xff]
        %v800 = vld [vmem:[#allocation10 + $0x140] sm:$0xff]
        %v801 = vld [vmem:[#allocation10 + $0x148] sm:$0xff]
        %v802 = vld [vmem:[#allocation10 + $0x150] sm:$0xff]
        %v803 = vld [vmem:[#allocation10 + $0x158] sm:$0xff]
        %v804 = vld [vmem:[#allocation10 + $0x160] sm:$0xff]
        %v805 = vld [vmem:[#allocation10 + $0x168] sm:$0xff]
        %v806 = vld [vmem:[#allocation10 + $0x170] sm:$0xff]
        %v807 = vld [vmem:[#allocation10 + $0x178] sm:$0xff]
        %v808 = vld [vmem:[#allocation10 + $0x180] sm:$0xff]
        %v809 = vld [vmem:[#allocation10 + $0x188] sm:$0xff]
        %v810 = vld [vmem:[#allocation10 + $0x190] sm:$0xff]
        %v811 = vld [vmem:[#allocation10 + $0x198] sm:$0xff]
        %v812 = vld [vmem:[#allocation10 + $0x1a0] sm:$0xff]
        %v813 = vld [vmem:[#allocation10 + $0x1a8] sm:$0xff]
        %v814 = vld [vmem:[#allocation10 + $0x1b0] sm:$0xff]
        %v815 = vld [vmem:[#allocation10 + $0x1b8] sm:$0xff]
        %v816 = vld [vmem:[#allocation10 + $0x1c0] sm:$0xff]
        %v817 = vld [vmem:[#allocation10 + $0x1c8] sm:$0xff]
        %v818 = vld [vmem:[#allocation10 + $0x1d0] sm:$0xff]
        %v819 = vld [vmem:[#allocation10 + $0x1d8] sm:$0xff]
        %v820 = vld [vmem:[#allocation10 + $0x1e0] sm:$0xff]
        %v821 = vld [vmem:[#allocation10 + $0x1e8] sm:$0xff]
        %v822 = vld [vmem:[#allocation10 + $0x1f0] sm:$0xff]
        %v823 = vld [vmem:[#allocation10 + $0x1f8] sm:$0xff]
        %v825 = vlaneseq
        %v826 = vshrl.u32 %v825, 7
        %v827 = vsub.s32 0, %v826
        %v828 = vrot.slane %v725, %v827
        %v829 = vlaneseq
        %v830 = vshrl.u32 %v829, 7
        %v831 = vsub.s32 1, %v830
        %v832 = vrot.slane %v725, %v831
        %835 = vmatprep.subr.mxu0 %v761
        %836 = vmatpush1.msra.mxu0 %v760
        %837 = vmatprep.subr.mxu0 %v763
        %838 = vmatpush1.msra.mxu0 %v762
        %839 = vmatprep.subr.mxu0 %v765
        %840 = vmatpush1.msra.mxu0 %v764
        %841 = vmatprep.subr.mxu0 %v767
        %842 = vmatpush1.msra.mxu0 %v766
        %843 = vmatprep.subr.mxu0 %v769
        %844 = vmatpush1.msra.mxu0 %v768
        %845 = vmatprep.subr.mxu0 %v771
        %846 = vmatpush1.msra.mxu0 %v770
        %847 = vmatprep.subr.mxu0 %v773
        %848 = vmatpush1.msra.mxu0 %v772
        %849 = vmatprep.subr.mxu0 %v775
        %850 = vmatpush1.msra.mxu0 %v774
        %851 = vmatprep.subr.mxu0 %v777
        %852 = vmatpush1.msra.mxu0 %v776
        %853 = vmatprep.subr.mxu0 %v779
        %854 = vmatpush1.msra.mxu0 %v778
        %855 = vmatprep.subr.mxu0 %v781
        %856 = vmatpush1.msra.mxu0 %v780
        %857 = vmatprep.subr.mxu0 %v783
        %858 = vmatpush1.msra.mxu0 %v782
        %859 = vmatprep.subr.mxu0 %v785
        %860 = vmatpush1.msra.mxu0 %v784
        %861 = vmatprep.subr.mxu0 %v787
        %862 = vmatpush1.msra.mxu0 %v786
        %863 = vmatprep.subr.mxu0 %v789
        %864 = vmatpush1.msra.mxu0 %v788
        %865 = vmatprep.subr.mxu0 %v791
        %866 = vmatpush1.msra.mxu0 %v790
        %867 = vmatprep.subr.mxu0 %v793
        %868 = vmatpush1.msra.mxu0 %v792
        %869 = vmatprep.subr.mxu0 %v795
        %870 = vmatpush1.msra.mxu0 %v794
        %871 = vmatprep.subr.mxu0 %v797
        %872 = vmatpush1.msra.mxu0 %v796
        %873 = vmatprep.subr.mxu0 %v799
        %874 = vmatpush1.msra.mxu0 %v798
        %875 = vmatprep.subr.mxu0 %v801
        %876 = vmatpush1.msra.mxu0 %v800
        %877 = vmatprep.subr.mxu0 %v803
        %878 = vmatpush1.msra.mxu0 %v802
        %879 = vmatprep.subr.mxu0 %v805
        %880 = vmatpush1.msra.mxu0 %v804
        %881 = vmatprep.subr.mxu0 %v807
        %882 = vmatpush1.msra.mxu0 %v806
        %883 = vmatprep.subr.mxu0 %v809
        %884 = vmatpush1.msra.mxu0 %v808
        %885 = vmatprep.subr.mxu0 %v811
        %886 = vmatpush1.msra.mxu0 %v810
        %887 = vmatprep.subr.mxu0 %v813
        %888 = vmatpush1.msra.mxu0 %v812
        %889 = vmatprep.subr.mxu0 %v815
        %890 = vmatpush1.msra.mxu0 %v814
        %891 = vmatprep.subr.mxu0 %v817
        %892 = vmatpush1.msra.mxu0 %v816
        %893 = vmatprep.subr.mxu0 %v819
        %894 = vmatpush1.msra.mxu0 %v818
        %895 = vmatprep.subr.mxu0 %v821
        %896 = vmatpush1.msra.mxu0 %v820
        %897 = vmatprep.subr.mxu0 %v823
        %898 = vmatpush1.msra.mxu0 %v822
        %899 = vmatprep.mubr.f32.mxu0 %v759
        %900 = vmatmul.mubr.f32.gmra.mrb[0].mxu0 %v758
        %v901 = vpop.f32.mrb[0].mxu0
        %v902 = vadd.f32 %v828, %v901
        %v903 = vpop.f32.mrb[0].mxu0
        %v904 = vadd.f32 %v832, %v903
        %905 = vdwg.mxu0
        %906 = vst [vmem:[%s346] sm:$0xff] %v902
        %907 = vst [vmem:[%s346 + $0x8] sm:$0xff] %v904
        %s908 = sand.u32 %s171, 1
        %s909 = scalar_lea.sflag [#allocation4], %s908
        %s910 = sand.u32 %s171, 1
        %s911 = smul.addr %s910, 16
        %s912 = scalar_lea.vmem [#allocation11], %s911
        // Predicated region
        $region65: #{tpu_custom_call.1} parent=43 // pred_check
          %p913 = pneg %p181
        $region66: #{tpu_custom_call.1} parent=43 // pred_check_branch
          %915 = sbr.rel (%p913) target = $region68
        $region67: #{tpu_custom_call.1} parent=43 // pred_region
          %s917 = ssub.s32 256, 256
          %918 = vsyncadd %s909, %s917
          %s919 = smul.addr %s27, 2
          %s920 = smul.addr %s919, 128
          %s921 = scalar_lea.hbm %s6, %s920
          %s923 = sshll.u32 %s912, 4
          %s924 = int_to_ptr.vmem [resolvable:$true] %s923
          %926 = dma.vmem_to_hbm [thread:$0]  %s924, 256, %s921, %s909
        $region68: #{tpu_custom_call.1} parent=43 // pred_fallthru
          _
      $region44: #{tpu_custom_call.1} parent=5 // pred_fallthru
        _
      %p927 = scmp.le.s32.totalorder 2, %s22
      // Predicated region
      $region69: #{tpu_custom_call.1} parent=5 // pred_check
        %p928 = pneg %p927
      $region70: #{tpu_custom_call.1} parent=5 // pred_check_branch
        %930 = sbr.rel (%p928) target = $region72
      $region71: #{tpu_custom_call.1} parent=5 // pred_region
        %s931 = ssub.s32 %s22, 2
        // Predicated region
        $region73: #{tpu_custom_call.1} parent=71 // pred_check
          %p932 = pneg %p187
        $region74: #{tpu_custom_call.1} parent=71 // pred_check_branch
          %934 = sbr.rel (%p932) target = $region76
        $region75: #{tpu_custom_call.1} parent=71 // pred_region
          %s935 = sand.u32 %s172, 1
          %s936 = scalar_lea.sflag [#allocation4], %s935
          %s937 = sand.u32 %s172, 1
          %s938 = smul.addr %s937, 16
          %s939 = scalar_lea.vmem [#allocation11], %s938
          %940 = dma.done %s936, 256
        $region76: #{tpu_custom_call.1} parent=71 // pred_fallthru
          _
      $region72: #{tpu_custom_call.1} parent=5 // pred_fallthru
        _
    $region6: #{tpu_custom_call.1} parent=1 // loop_footer
      %s26 = sadd.s32 1, %s22
    $region7: #{tpu_custom_call.1} parent=1 // loop_footer_branch
      %21 = sbr.rel target = $region3
    $region8: #{tpu_custom_call.1} parent=1 // loop_exit
      _
    %941 = vsyncpa [#allocation3], 1
    %s942 = scalar_lea.sflag [#allocation3], 1
    %943 = vsyncpa %s942, 1
    %944 = vsyncpa [#allocation6], 1
    %s945 = scalar_lea.sflag [#allocation6], 1
    %946 = vsyncpa %s945, 1
    %947 = vsyncpa [#allocation9], 1
    %948 = vsyncpa [#allocation4], 1
    %s949 = scalar_lea.sflag [#allocation4], 1
    %950 = vsyncpa %s949, 1

</llo_original>
